<compile_context>
chip_gen: v7x
topology: tpu7x:2x2x1
jax: 0.10.0
libtpu: 0.0.40
codegen_flags: <defaults>
</compile_context>

<pallas_src>
import numpy as np

import jax
import jax.numpy as jnp
from jax.experimental import pallas as pl
from jax.experimental.pallas import tpu as pltpu


def _round_up(x, m):
    return ((x + m - 1) // m) * m


def _chip_budgets():
    """(tile-budget bytes, vmem_limit_bytes) per TPU generation."""
    try:
        kind = jax.devices()[0].device_kind.lower()
    except Exception:
        kind = ""
    if "v6" in kind:          # 128 MiB VMEM: big tiles, run near HBM roofline
        return 20 << 20, 96 << 20
    if "v5" in kind:          # 128 MiB VMEM but spill-sensitive (1 vst slot)
        return 12 << 20, 64 << 20
    # v7x (64 MiB / TensorCore) or unknown: stay conservative.
    return 10 << 20, 48 << 20


def _pick_batch_tile(B, S, D, Fp, Cp, w_max, x_item, budget_bytes):
    """Largest batch tile whose *real* per-step working set fits the budget."""
    K = w_max * D
    # Grid-invariant operands (double-buffered by the pipeline by default).
    const_bytes = 2 * (K * Fp * x_item + S * Fp * 4 + Fp * Cp * x_item + Cp * 4)
    # Per batch-row: double-buffered streamed blocks + in-kernel temps.
    per_row = (2 * (S * D * x_item + S * 4 + 2 * Cp * 4)   # x, mask, dm, out
               + 2 * S * D * 4                             # masked f32 x + roll tmp
               + S * K * x_item                            # im2col scratch slab
               + 2 * S * Fp * 4)                           # f32 acc + biased conv
    avail = max(budget_bytes - const_bytes, 8 * per_row)
    tb = avail // max(per_row, 1)
    tb = max(8, min(1024, (tb // 8) * 8))
    if B >= 16:               # keep >= 2 grid steps so both v7x TCs get work
        tb = min(tb, _round_up(-(-B // 2), 8))
    return int(min(tb, _round_up(B, 8)))


def _cnn_classifier_kernel(x_ref, m_ref, dm_ref, wc_ref, b_ref, wl_ref, bl_ref,
                           out_ref, xcol_ref):
    TB, S, D = x_ref.shape
    K, Fp = wc_ref.shape
    w_max = K // D
    R = TB * S

    # Token masking with reference semantics (where, not multiply -> robust to
    # NaN/Inf in padded-token embeddings).  Elementwise math stays in f32
    # (v5e-friendly); single downcast right before the MXU.
    xm = jnp.where(m_ref[...] == 0.0, 0.0, x_ref[...].astype(jnp.float32))
    x2 = xm.reshape(R, D)

    # im2col: tap w goes to scratch columns [w*D, (w+1)*D).  The row shift is
    # a cheap XLU sublane rotation of the narrow (R, D) activation instead of
    # rolling the wide (R, Fp) f32 partial sums.  Wrap-around rows only land
    # on positions the folded position mask (-1e9 in the bias) zeroes.
    xcol_ref[:, 0:D] = x2.astype(xcol_ref.dtype)
    for w in range(1, w_max):
        xcol_ref[:, w * D:(w + 1) * D] = pltpu.roll(
            x2, shift=R - w, axis=0).astype(xcol_ref.dtype)

    # ONE fused lane/K-dense MXU matmul for all conv branches and taps.
    acc = jnp.dot(xcol_ref[...], wc_ref[...], preferred_element_type=jnp.float32)

    # Bias with the position-validity mask folded in; relu zeroes invalid and
    # roll-contaminated positions, so the max-pool matches the reference.
    conv = jnp.maximum(acc.reshape(TB, S, Fp) + b_ref[...], 0.0)
    feats = jnp.max(conv, axis=1)                              # (TB, Fp)

    # TODO(synk): dropout treated as identity (eval mode); no RNG drop.
    logits = jnp.dot(feats.astype(wl_ref.dtype), wl_ref[...],
                     preferred_element_type=jnp.float32) + bl_ref[...]
    out_ref[...] = jnp.where(dm_ref[...] == 0.0, -1000000000.0, logits)


def cnn_classifier_forward(x, mask, domain_mask, params, kernel_sizes, *,
                           compute_dtype=jnp.bfloat16, batch_tile=None,
                           vmem_limit_bytes=None, interpret=False):
    """params = (conv_ws [(num_i, width_i, D)], conv_bs [(num_i,)], wl (C,F), bl (C,))."""
    conv_ws, conv_bs, wl, bl = params
    widths = [int(w.shape[1]) for w in conv_ws]
    nums = [int(w.shape[0]) for w in conv_ws]
    assert len(conv_ws) == len(kernel_sizes)

    f32 = jnp.float32
    B, S0, D = x.shape
    C = int(wl.shape[0])
    F = int(sum(nums))
    w_max = max(widths)

    # The module pads to kernel_sizes[-1] (assumes sorted sizes); the padded
    # length must still cover the widest kernel for the conv to be defined.
    S_ref = max(S0, int(kernel_sizes[-1]))
    assert S_ref >= w_max, "padded sequence must cover the widest kernel"

    x_item = jnp.dtype(compute_dtype).itemsize
    sub = 8 if x_item == 4 else (16 if x_item == 2 else 32)
    S = _round_up(S_ref, sub)                 # sublane-aligned physical length
    Fp = _round_up(F, 128)                    # lane-dense feature width
    Cp = _round_up(C, 128)                    # lane-dense class width
    K = w_max * D                             # fused contraction length

    # ---------- host-side packing / pre-transposition (layout only) ----------
    # Conv weights -> im2col slab (w_max*D, Fp); branch i occupies columns
    # [off_i, off_i+num_i) and only its first width_i taps are non-zero.
    slabs = []
    for Wb, width in zip(conv_ws, widths):
        Wt = jnp.transpose(Wb.astype(f32), (1, 2, 0))          # (width, D, num)
        Wt = jnp.pad(Wt, ((0, w_max - width), (0, 0), (0, 0)))
        slabs.append(Wt)
    wc = jnp.concatenate(slabs, axis=2)                        # (w_max, D, F)
    wc = jnp.pad(wc, ((0, 0), (0, 0), (0, Fp - F)))
    wc = wc.reshape(K, Fp).astype(compute_dtype)

    # Bias with folded position-validity mask: branch i valid at positions
    # < S_ref - width_i + 1 (reference conv length); everything else -1e9.
    bc = jnp.pad(jnp.concatenate([b.astype(f32) for b in conv_bs]), (0, Fp - F))
    pm_np = np.zeros((1, S, Fp), np.float32)
    off = 0
    for width, num in zip(widths, nums):
        pm_np[0, :S_ref - width + 1, off:off + num] = 1.0
        off += num
    pm = jnp.asarray(pm_np)
    b_pm = bc[None, None, :] + (pm - 1.0) * 1.0e9              # (1, S, Fp)

    wl_t = jnp.pad(wl.astype(f32).T, ((0, Fp - F), (0, Cp - C)))
    wl_t = wl_t.astype(compute_dtype)                          # (Fp, Cp)
    bl_p = jnp.pad(bl.astype(f32), (0, Cp - C)).reshape(1, Cp)

    # ---------- activations: mask transpose, time pad, batch pad, dtype ------
    mask_t = jnp.swapaxes(mask, -1, -2).astype(f32)            # (B, S0, 1)
    if S > S0:
        x = jnp.pad(x, ((0, 0), (0, S - S0), (0, 0)))
        mask_t = jnp.pad(mask_t, ((0, 0), (0, S - S0), (0, 0)))

    budget, vmem_limit = _chip_budgets()
    if vmem_limit_bytes is not None:
        vmem_limit = int(vmem_limit_bytes)
    if batch_tile is not None:
        TB = max(8, _round_up(int(batch_tile), 8))
    else:
        TB = _pick_batch_tile(B, S, D, Fp, Cp, w_max, x_item, budget)
    Bp = _round_up(B, TB)

    x_p = jnp.pad(x.astype(compute_dtype), ((0, Bp - B), (0, 0), (0, 0)))
    m_p = jnp.pad(mask_t, ((0, Bp - B), (0, 0), (0, 0)))
    dm_p = jnp.pad(domain_mask.astype(f32), ((0, Bp - B), (0, Cp - C)))

    grid = (Bp // TB,)
    # TODO(synk): on v7x, single-buffer the constant operands
    # (pipeline_mode=pl.Buffered(1)) once that BlockSpec kwarg is stable here.
    in_specs = [
        pl.BlockSpec((TB, S, D), lambda i: (i, 0, 0)),         # x
        pl.BlockSpec((TB, S, 1), lambda i: (i, 0, 0)),         # token mask
        pl.BlockSpec((TB, Cp), lambda i: (i, 0)),              # domain mask
        pl.BlockSpec((K, Fp), lambda i: (0, 0)),               # im2col conv W
        pl.BlockSpec((1, S, Fp), lambda i: (0, 0, 0)),         # bias + pos mask
        pl.BlockSpec((Fp, Cp), lambda i: (0, 0)),              # linear W^T
        pl.BlockSpec((1, Cp), lambda i: (0, 0)),               # linear b
    ]
    out_spec = pl.BlockSpec((TB, Cp), lambda i: (i, 0))

    out = pl.pallas_call(
        _cnn_classifier_kernel,
        out_shape=jax.ShapeDtypeStruct((Bp, Cp), jnp.float32),
        grid=grid,
        in_specs=in_specs,
        out_specs=out_spec,
        scratch_shapes=[pltpu.VMEM((TB * S, K), compute_dtype)],
        compiler_params=pltpu.CompilerParams(
            dimension_semantics=("parallel",),
            vmem_limit_bytes=int(vmem_limit)),
        interpret=interpret,
    )(x_p, m_p, dm_p, wc, b_pm, wl_t, bl_p)

    return out[:B, :C]


def reference_forward(x, mask, domain_mask, params, kernel_sizes):
    """Plain-JAX reference mirroring the PyTorch forward (eval mode)."""
    conv_ws, conv_bs, wl, bl = params
    max_k = kernel_sizes[-1]
    m_t = jnp.swapaxes(mask, -1, -2)
    xm = jnp.where(m_t == 0, 0.0, x)
    if xm.shape[1] < max_k:
        xm = jnp.pad(xm, ((0, 0), (0, max_k - xm.shape[1]), (0, 0)))
    feats = []
    for W, b in zip(conv_ws, conv_bs):
        num, width, _ = W.shape
        L = xm.shape[1] - width + 1
        out = jnp.zeros((xm.shape[0], L, num), jnp.float32)
        for w in range(width):
            out = out + jnp.einsum('bld,nd->bln', xm[:, w:w + L, :], W[:, w, :])
        out = jax.nn.relu(out + b[None, None, :])
        feats.append(jnp.max(out, axis=1))
    feats = jnp.concatenate(feats, axis=-1)
    logits = feats @ wl.T + bl
    return jnp.where(domain_mask == 0, -1000000000.0, logits)


if __name__ == "__main__":
    key = jax.random.PRNGKey(0)
    B, S, D = 2, 8, 32
    num_class = 4
    kernel_nums = [8, 8, 16]
    kernel_sizes = [2, 3, 4]

    keys = jax.random.split(key, 10)
    x = jax.random.normal(keys[0], (B, S, D), jnp.float32)

    # mask: (B, 1, S), 1 = valid token, 0 = pad
    lens = jnp.array([S, S - 3])
    pos = jnp.arange(S)
    mask = (pos[None, :] < lens[:, None]).astype(jnp.float32)[:, None, :]

    # domain_mask: (B, num_class), 0 -> logit forced to -1e9
    domain_mask = jnp.array([[1, 1, 0, 1],
                             [0, 1, 1, 1]], jnp.float32)

    # deterministic synthetic parameters (shapes from nn.Conv2d / nn.Linear)
    conv_ws, conv_bs = [], []
    for i, (num, width) in enumerate(zip(kernel_nums, kernel_sizes)):
        conv_ws.append(0.1 * jax.random.normal(keys[1 + i], (num, width, D), jnp.float32))
        conv_bs.append(0.1 * jax.random.normal(keys[4 + i], (num,), jnp.float32))
    feat_dim = sum(kernel_nums)
    wl = 0.1 * jax.random.normal(keys[8], (num_class, feat_dim), jnp.float32)
    bl = 0.1 * jax.random.normal(keys[9], (num_class,), jnp.float32)
    params = (conv_ws, conv_bs, wl, bl)

    ref = reference_forward(x, mask, domain_mask, params, kernel_sizes)

    # f32 operand path: strict structural check.
    out_f32 = cnn_classifier_forward(x, mask, domain_mask, params, kernel_sizes,
                                     compute_dtype=jnp.float32)
    out_f32 = jax.block_until_ready(out_f32)
    assert out_f32.shape == (B, num_class)
    assert bool(jnp.allclose(out_f32, ref, atol=1e-3, rtol=1e-3)), (out_f32, ref)

    # bf16 operand path (default, bandwidth/MXU optimized): loose tolerance.
    out_bf16 = cnn_classifier_forward(x, mask, domain_mask, params, kernel_sizes,
                                      compute_dtype=jnp.bfloat16)
    out_bf16 = jax.block_until_ready(out_bf16)
    assert out_bf16.shape == (B, num_class)
    assert bool(jnp.allclose(out_bf16, ref, atol=5e-2, rtol=5e-2)), (out_bf16, ref)

    print("KERNEL_OK")
</pallas_src>

<mosaic_0001>
module attributes {stable_mosaic.version = 11 : i64} {
  func.func @_cnn_classifier_kernel(%arg0: i32, %arg1: memref<8x8x32xf32, #tpu.memory_space<vmem>>, %arg2: memref<8x8x1xf32, #tpu.memory_space<vmem>>, %arg3: memref<8x128xf32, #tpu.memory_space<vmem>>, %arg4: memref<128x128xf32, #tpu.memory_space<vmem>>, %arg5: memref<1x8x128xf32, #tpu.memory_space<vmem>>, %arg6: memref<128x128xf32, #tpu.memory_space<vmem>>, %arg7: memref<1x128xf32, #tpu.memory_space<vmem>>, %arg8: memref<8x128xf32, #tpu.memory_space<vmem>>, %arg9: memref<64x128xf32, #tpu.memory_space<vmem>>) attributes {dimension_semantics = [#tpu.dimension_semantics<parallel>], iteration_bounds = array<i64: 1>, scalar_prefetch = 0 : i64, scratch_operands = 1 : i64, tpu.core_type = #tpu.core_type<tc>, window_params = [{transform_indices = @transform_0, window_bounds = array<i64: 8, 8, 32>}, {transform_indices = @transform_1, window_bounds = array<i64: 8, 8, 1>}, {transform_indices = @transform_2, window_bounds = array<i64: 8, 128>}, {pipeline_mode = #tpu.pipeline_mode<synchronous>, transform_indices = @transform_3, window_bounds = array<i64: 128, 128>}, {pipeline_mode = #tpu.pipeline_mode<synchronous>, transform_indices = @transform_4, window_bounds = array<i64: 1, 8, 128>}, {pipeline_mode = #tpu.pipeline_mode<synchronous>, transform_indices = @transform_5, window_bounds = array<i64: 128, 128>}, {pipeline_mode = #tpu.pipeline_mode<synchronous>, transform_indices = @transform_6, window_bounds = array<i64: 1, 128>}, {transform_indices = @transform_7, window_bounds = array<i64: 8, 128>}]} {
    %c0 = arith.constant 0 : index
    %c0_0 = arith.constant 0 : index
    %c0_1 = arith.constant 0 : index
    %0 = vector.load %arg2[%c0, %c0_0, %c0_1] : memref<8x8x1xf32, #tpu.memory_space<vmem>>, vector<8x8x1xf32>
    %cst = arith.constant 0.000000e+00 : f32
    %1 = vector.broadcast %cst : f32 to vector<8x8x1xf32>
    %2 = arith.cmpf oeq, %0, %1 : vector<8x8x1xf32>
    %c0_2 = arith.constant 0 : index
    %c0_3 = arith.constant 0 : index
    %c0_4 = arith.constant 0 : index
    %3 = vector.load %arg1[%c0_2, %c0_3, %c0_4] : memref<8x8x32xf32, #tpu.memory_space<vmem>>, vector<8x8x32xf32>
    %cst_5 = arith.constant 0.000000e+00 : f32
    %4 = vector.shape_cast %2 : vector<8x8x1xi1> to vector<8x8x1xi1>
    %5 = vector.broadcast %4 : vector<8x8x1xi1> to vector<8x8x32xi1>
    %6 = vector.broadcast %cst_5 : f32 to vector<8x8x32xf32>
    %7 = arith.select %5, %6, %3 : vector<8x8x32xi1>, vector<8x8x32xf32>
    %8 = vector.shape_cast %7 : vector<8x8x32xf32> to vector<64x32xf32>
    %c0_6 = arith.constant 0 : index
    %c0_7 = arith.constant 0 : index
    %9 = vector.load %arg9[%c0_6, %c0_7] : memref<64x128xf32, #tpu.memory_space<vmem>>, vector<64x32xf32>
    tpu.vector_store %arg9[%c0_6, %c0_7], %8 {strides = array<i32>} : memref<64x128xf32, #tpu.memory_space<vmem>>, vector<64x32xf32>,
    %c63_i32 = arith.constant 63 : i32
    %10 = tpu.dynamic_rotate %8 by %c63_i32 dim 0 : vector<64x32xf32>, i32 -> vector<64x32xf32>
    %c0_8 = arith.constant 0 : index
    %c32 = arith.constant 32 : index
    %11 = vector.load %arg9[%c0_8, %c32] : memref<64x128xf32, #tpu.memory_space<vmem>>, vector<64x32xf32>
    tpu.vector_store %arg9[%c0_8, %c32], %10 {strides = array<i32>} : memref<64x128xf32, #tpu.memory_space<vmem>>, vector<64x32xf32>,
    %c62_i32 = arith.constant 62 : i32
    %12 = tpu.dynamic_rotate %8 by %c62_i32 dim 0 : vector<64x32xf32>, i32 -> vector<64x32xf32>
    %c0_9 = arith.constant 0 : index
    %c64 = arith.constant 64 : index
    %13 = vector.load %arg9[%c0_9, %c64] : memref<64x128xf32, #tpu.memory_space<vmem>>, vector<64x32xf32>
    tpu.vector_store %arg9[%c0_9, %c64], %12 {strides = array<i32>} : memref<64x128xf32, #tpu.memory_space<vmem>>, vector<64x32xf32>,
    %c61_i32 = arith.constant 61 : i32
    %14 = tpu.dynamic_rotate %8 by %c61_i32 dim 0 : vector<64x32xf32>, i32 -> vector<64x32xf32>
    %c0_10 = arith.constant 0 : index
    %c96 = arith.constant 96 : index
    %15 = vector.load %arg9[%c0_10, %c96] : memref<64x128xf32, #tpu.memory_space<vmem>>, vector<64x32xf32>
    tpu.vector_store %arg9[%c0_10, %c96], %14 {strides = array<i32>} : memref<64x128xf32, #tpu.memory_space<vmem>>, vector<64x32xf32>,
    %c0_11 = arith.constant 0 : index
    %c0_12 = arith.constant 0 : index
    %16 = vector.load %arg9[%c0_11, %c0_12] : memref<64x128xf32, #tpu.memory_space<vmem>>, vector<64x128xf32>
    %c0_13 = arith.constant 0 : index
    %c0_14 = arith.constant 0 : index
    %17 = vector.load %arg4[%c0_13, %c0_14] : memref<128x128xf32, #tpu.memory_space<vmem>>, vector<128x128xf32>
    %cst_15 = arith.constant dense<0.000000e+00> : vector<64x128xf32>
    %18 = tpu.matmul %16, %17, %cst_15 {dimension_numbers = #tpu.dot_dimension_numbers<[1], [0], [0], [1], [0, 0, 1, 1], [], []>} : vector<64x128xf32>, vector<128x128xf32>, vector<64x128xf32> -> vector<64x128xf32>
    %19 = vector.shape_cast %18 : vector<64x128xf32> to vector<8x8x128xf32>
    %c0_16 = arith.constant 0 : index
    %c0_17 = arith.constant 0 : index
    %c0_18 = arith.constant 0 : index
    %20 = vector.load %arg5[%c0_16, %c0_17, %c0_18] : memref<1x8x128xf32, #tpu.memory_space<vmem>>, vector<1x8x128xf32>
    %21 = vector.broadcast %20 : vector<1x8x128xf32> to vector<8x8x128xf32>
    %22 = arith.addf %19, %21 : vector<8x8x128xf32>
    %cst_19 = arith.constant 0.000000e+00 : f32
    %23 = vector.broadcast %cst_19 : f32 to vector<8x8x128xf32>
    %24 = arith.maximumf %22, %23 : vector<8x8x128xf32>
    %cst_20 = arith.constant dense<0xFF800000> : vector<8x128xf32>
    %25 = vector.multi_reduction <maximumf>, %24, %cst_20 [1] : vector<8x8x128xf32> to vector<8x128xf32>
    %c0_21 = arith.constant 0 : index
    %c0_22 = arith.constant 0 : index
    %26 = vector.load %arg6[%c0_21, %c0_22] : memref<128x128xf32, #tpu.memory_space<vmem>>, vector<128x128xf32>
    %cst_23 = arith.constant dense<0.000000e+00> : vector<8x128xf32>
    %27 = tpu.matmul %25, %26, %cst_23 {dimension_numbers = #tpu.dot_dimension_numbers<[1], [0], [0], [1], [0, 0, 1, 1], [], []>} : vector<8x128xf32>, vector<128x128xf32>, vector<8x128xf32> -> vector<8x128xf32>
    %c0_24 = arith.constant 0 : index
    %c0_25 = arith.constant 0 : index
    %28 = vector.load %arg7[%c0_24, %c0_25] : memref<1x128xf32, #tpu.memory_space<vmem>>, vector<1x128xf32>
    %29 = vector.broadcast %28 : vector<1x128xf32> to vector<8x128xf32>
    %30 = arith.addf %27, %29 : vector<8x128xf32>
    %c0_26 = arith.constant 0 : index
    %c0_27 = arith.constant 0 : index
    %31 = vector.load %arg3[%c0_26, %c0_27] : memref<8x128xf32, #tpu.memory_space<vmem>>, vector<8x128xf32>
    %cst_28 = arith.constant 0.000000e+00 : f32
    %32 = vector.broadcast %cst_28 : f32 to vector<8x128xf32>
    %33 = arith.cmpf oeq, %31, %32 : vector<8x128xf32>
    %cst_29 = arith.constant -1.000000e+09 : f32
    %34 = vector.broadcast %cst_29 : f32 to vector<8x128xf32>
    %35 = arith.select %33, %34, %30 : vector<8x128xi1>, vector<8x128xf32>
    %c0_30 = arith.constant 0 : index
    %c0_31 = arith.constant 0 : index
    %36 = vector.load %arg8[%c0_30, %c0_31] : memref<8x128xf32, #tpu.memory_space<vmem>>, vector<8x128xf32>
    tpu.vector_store %arg8[%c0_30, %c0_31], %35 {strides = array<i32>} : memref<8x128xf32, #tpu.memory_space<vmem>>, vector<8x128xf32>,
    return
  }
  func.func @transform_0(%arg0: i32) -> (i32, i32, i32) {
    %c0_i32 = arith.constant 0 : i32
    %c0_i32_0 = arith.constant 0 : i32
    %c0_i32_1 = arith.constant 0 : i32
    return %arg0, %c0_i32, %c0_i32_0 : i32, i32, i32
  }
  func.func @transform_1(%arg0: i32) -> (i32, i32, i32) {
    %c0_i32 = arith.constant 0 : i32
    %c0_i32_0 = arith.constant 0 : i32
    %c0_i32_1 = arith.constant 0 : i32
    return %arg0, %c0_i32, %c0_i32_0 : i32, i32, i32
  }
  func.func @transform_2(%arg0: i32) -> (i32, i32) {
    %c0_i32 = arith.constant 0 : i32
    %c0_i32_0 = arith.constant 0 : i32
    return %arg0, %c0_i32 : i32, i32
  }
  func.func @transform_3(%arg0: i32) -> (i32, i32) {
    %c0_i32 = arith.constant 0 : i32
    %c0_i32_0 = arith.constant 0 : i32
    %c0_i32_1 = arith.constant 0 : i32
    return %c0_i32, %c0_i32_0 : i32, i32
  }
  func.func @transform_4(%arg0: i32) -> (i32, i32, i32) {
    %c0_i32 = arith.constant 0 : i32
    %c0_i32_0 = arith.constant 0 : i32
    %c0_i32_1 = arith.constant 0 : i32
    %c0_i32_2 = arith.constant 0 : i32
    return %c0_i32, %c0_i32_0, %c0_i32_1 : i32, i32, i32
  }
  func.func @transform_5(%arg0: i32) -> (i32, i32) {
    %c0_i32 = arith.constant 0 : i32
    %c0_i32_0 = arith.constant 0 : i32
    %c0_i32_1 = arith.constant 0 : i32
    return %c0_i32, %c0_i32_0 : i32, i32
  }
  func.func @transform_6(%arg0: i32) -> (i32, i32) {
    %c0_i32 = arith.constant 0 : i32
    %c0_i32_0 = arith.constant 0 : i32
    %c0_i32_1 = arith.constant 0 : i32
    return %c0_i32, %c0_i32_0 : i32, i32
  }
  func.func @transform_7(%arg0: i32) -> (i32, i32) {
    %c0_i32 = arith.constant 0 : i32
    %c0_i32_0 = arith.constant 0 : i32
    return %arg0, %c0_i32 : i32, i32
  }
}

</mosaic_0001>

<llo_original>
// kernel: tpu_custom_call.1
$region0: #{tpu_custom_call.1}
  #allocation0 [shape = 'u32[]', space=smem, size = 0x4, offset = 0x4, fixed_abs, tag = 'smem constant byte address 0x4 - core index']
  #allocation1 [shape = 'u32[144,128]{1,0:T(1,128)}', space=vmem, size = 0x12000, scoped, tag = 'internal scratch']
  #allocation2 [shape = 'f32[64,128]{1,0:T(8,128)}', space=vmem, size = 0x8000, scoped, tag = 'scratch operand']
  %s0 = inlined_call_operand.vmem [shape: f32[8,8,32], index: 0, kind: input, shape index: {}]
  %s1 = inlined_call_operand.vmem [shape: f32[8,8,1], index: 1, kind: input, shape index: {}]
  %s2 = inlined_call_operand.vmem [shape: f32[8,128], index: 2, kind: input, shape index: {}]
  %s3 = inlined_call_operand.hbm [shape: f32[128,128], index: 3, kind: input, shape index: {}]
  %s4 = inlined_call_operand.vmem [shape: f32[1,8,128], index: 4, kind: input, shape index: {}]
  %s5 = inlined_call_operand.hbm [shape: f32[128,128], index: 5, kind: input, shape index: {}]
  %s6 = inlined_call_operand.vmem [shape: f32[1,128], index: 6, kind: input, shape index: {}]
  %s7 = inlined_call_operand.hbm [shape: f32[8,128], index: 7, kind: output, shape index: {}]
  %s8 = sld [smem:[#allocation0]]
  $region46: #{tpu_custom_call.1} parent=0
    _
  %s10 = ssub.s32 1, %s8
  %s11 = scalar_select 0, %s10, %s8
  $region1: #{tpu_custom_call.1} parent=0
    #allocation3 [shape = 'u8[65536]{0}', space=vmem, size = 0x10000, scoped, tag = 'input window, operand 3, single buffered']
    #allocation4 [shape = 's32[1]{0}', space=sflag, size = 0x4, scoped, tag = 'scoped memory for tpu_custom_call.1']
    #allocation5 [shape = 's32[1]{0}', space=sflag, size = 0x4, scoped, tag = 'scoped memory for tpu_custom_call.1']
    #allocation6 [shape = 'u8[65536]{0}', space=vmem, size = 0x10000, scoped, tag = 'input window, operand 5, single buffered']
    #allocation7 [shape = 's32[1]{0}', space=sflag, size = 0x4, scoped, tag = 'scoped memory for tpu_custom_call.1']
    #allocation8 [shape = 'u8[4096]{0}', space=vmem, size = 0x1000, scoped, tag = 'output window, operand 0, single buffered']
    %12 = vsyncpa [#allocation4], 0
    %13 = vsyncpa [#allocation7], 0
    %14 = vsyncpa [#allocation5], 0
    // Predicated region
    $region2: #{tpu_custom_call.1} parent=1 // pred_check
      _
    $region3: #{tpu_custom_call.1} parent=1 // pred_check_branch
      %16 = sbr.rel (0) target = $region5
    $region4: #{tpu_custom_call.1} parent=1 // pred_region
      _
    $region5: #{tpu_custom_call.1} parent=1 // pred_fallthru
      _
    // Predicated region
    $region6: #{tpu_custom_call.1} parent=1 // pred_check
      _
    $region7: #{tpu_custom_call.1} parent=1 // pred_check_branch
      %18 = sbr.rel (0) target = $region9
    $region8: #{tpu_custom_call.1} parent=1 // pred_region
      _
    $region9: #{tpu_custom_call.1} parent=1 // pred_fallthru
      _
    // Predicated region
    $region10: #{tpu_custom_call.1} parent=1 // pred_check
      _
    $region11: #{tpu_custom_call.1} parent=1 // pred_check_branch
      %20 = sbr.rel (0) target = $region13
    $region12: #{tpu_custom_call.1} parent=1 // pred_region
      _
    $region13: #{tpu_custom_call.1} parent=1 // pred_fallthru
      _
    // Predicated region
    $region14: #{tpu_custom_call.1} parent=1 // pred_check
      _
    $region15: #{tpu_custom_call.1} parent=1 // pred_check_branch
      %22 = sbr.rel (0) target = $region17
    $region16: #{tpu_custom_call.1} parent=1 // pred_region
      %s24 = ssub.s32 2048, 2048
      %25 = vsyncadd [#allocation4], %s24
      %s26 = sshll.u32 [#allocation3], 4
      %s27 = int_to_ptr.vmem [resolvable:$true] %s26
      %32 = dma.hbm_to_vmem [thread:$0]  %s3, 2048, %s27, [#allocation4], 128, 128, 8
    $region17: #{tpu_custom_call.1} parent=1 // pred_fallthru
      _
    // Predicated region
    $region18: #{tpu_custom_call.1} parent=1 // pred_check
      _
    $region19: #{tpu_custom_call.1} parent=1 // pred_check_branch
      %34 = sbr.rel (0) target = $region21
    $region20: #{tpu_custom_call.1} parent=1 // pred_region
      _
    $region21: #{tpu_custom_call.1} parent=1 // pred_fallthru
      _
    // Predicated region
    $region22: #{tpu_custom_call.1} parent=1 // pred_check
      _
    $region23: #{tpu_custom_call.1} parent=1 // pred_check_branch
      %36 = sbr.rel (0) target = $region25
    $region24: #{tpu_custom_call.1} parent=1 // pred_region
      %s38 = ssub.s32 2048, 2048
      %39 = vsyncadd [#allocation7], %s38
      %s40 = sshll.u32 [#allocation6], 4
      %s41 = int_to_ptr.vmem [resolvable:$true] %s40
      %46 = dma.hbm_to_vmem [thread:$0]  %s5, 2048, %s41, [#allocation7], 128, 128, 8
    $region25: #{tpu_custom_call.1} parent=1 // pred_fallthru
      _
    // Predicated region
    $region26: #{tpu_custom_call.1} parent=1 // pred_check
      _
    $region27: #{tpu_custom_call.1} parent=1 // pred_check_branch
      %48 = sbr.rel (0) target = $region29
    $region28: #{tpu_custom_call.1} parent=1 // pred_region
      _
    $region29: #{tpu_custom_call.1} parent=1 // pred_fallthru
      _
    // Predicated region
    $region30: #{tpu_custom_call.1} parent=1 // pred_check
      _
    $region31: #{tpu_custom_call.1} parent=1 // pred_check_branch
      %50 = sbr.rel (0) target = $region33
    $region32: #{tpu_custom_call.1} parent=1 // pred_region
      %51 = dma.done [#allocation4], 2048
    $region33: #{tpu_custom_call.1} parent=1 // pred_fallthru
      _
    // Predicated region
    $region34: #{tpu_custom_call.1} parent=1 // pred_check
      _
    $region35: #{tpu_custom_call.1} parent=1 // pred_check_branch
      %53 = sbr.rel (0) target = $region37
    $region36: #{tpu_custom_call.1} parent=1 // pred_region
      %54 = dma.done [#allocation7], 2048
    $region37: #{tpu_custom_call.1} parent=1 // pred_fallthru
      _
    %v55 = vld [vmem:[%s1] sm:$0xff]
    %v56 = vld [vmem:[%s1 + $0x8] sm:$0xff]
    %v57 = vld [vmem:[%s1 + $0x10] sm:$0xff]
    %v58 = vld [vmem:[%s1 + $0x18] sm:$0xff]
    %v59 = vld [vmem:[%s1 + $0x20] sm:$0xff]
    %v60 = vld [vmem:[%s1 + $0x28] sm:$0xff]
    %v61 = vld [vmem:[%s1 + $0x30] sm:$0xff]
    %v62 = vld [vmem:[%s1 + $0x38] sm:$0xff]
    %vm63 = vcmp.eq.f32.partialorder %v55, 0.0
    %vm64 = vcmp.eq.f32.partialorder %v56, 0.0
    %vm65 = vcmp.eq.f32.partialorder %v57, 0.0
    %vm66 = vcmp.eq.f32.partialorder %v58, 0.0
    %vm67 = vcmp.eq.f32.partialorder %v59, 0.0
    %vm68 = vcmp.eq.f32.partialorder %v60, 0.0
    %vm69 = vcmp.eq.f32.partialorder %v61, 0.0
    %vm70 = vcmp.eq.f32.partialorder %v62, 0.0
    %v71 = vld [vmem:[%s0] sm:$0xff]
    %v72 = vld [vmem:[%s0 + $0x8] sm:$0xff]
    %v73 = vld [vmem:[%s0 + $0x10] sm:$0xff]
    %v74 = vld [vmem:[%s0 + $0x18] sm:$0xff]
    %v75 = vld [vmem:[%s0 + $0x20] sm:$0xff]
    %v76 = vld [vmem:[%s0 + $0x28] sm:$0xff]
    %v77 = vld [vmem:[%s0 + $0x30] sm:$0xff]
    %v78 = vld [vmem:[%s0 + $0x38] sm:$0xff]
    %v79 = vsel %vm63, 1, 0
    %v80 = vsel %vm64, 1, 0
    %v81 = vsel %vm65, 1, 0
    %v82 = vsel %vm66, 1, 0
    %v83 = vsel %vm67, 1, 0
    %v84 = vsel %vm68, 1, 0
    %v85 = vsel %vm69, 1, 0
    %v86 = vsel %vm70, 1, 0
    %87 = vset.pattern.permute.xlu0 0
    %88 = vperm.xlu0 %87, %v79
    %v89 = vpop.permute.xlu0 %88
    %90 = vset.pattern.permute.xlu0 0
    %91 = vperm.xlu0 %90, %v80
    %v92 = vpop.permute.xlu0 %91
    %93 = vset.pattern.permute.xlu0 0
    %94 = vperm.xlu0 %93, %v81
    %v95 = vpop.permute.xlu0 %94
    %96 = vset.pattern.permute.xlu0 0
    %97 = vperm.xlu0 %96, %v82
    %v98 = vpop.permute.xlu0 %97
    %99 = vset.pattern.permute.xlu0 0
    %100 = vperm.xlu0 %99, %v83
    %v101 = vpop.permute.xlu0 %100
    %102 = vset.pattern.permute.xlu0 0
    %103 = vperm.xlu0 %102, %v84
    %v104 = vpop.permute.xlu0 %103
    %105 = vset.pattern.permute.xlu0 0
    %106 = vperm.xlu0 %105, %v85
    %v107 = vpop.permute.xlu0 %106
    %108 = vset.pattern.permute.xlu0 0
    %109 = vperm.xlu0 %108, %v86
    %v110 = vpop.permute.xlu0 %109
    %vm111 = vcmp.eq.s32.totalorder %v89, 1
    %vm112 = vcmp.eq.s32.totalorder %v92, 1
    %vm113 = vcmp.eq.s32.totalorder %v95, 1
    %vm114 = vcmp.eq.s32.totalorder %v98, 1
    %vm115 = vcmp.eq.s32.totalorder %v101, 1
    %vm116 = vcmp.eq.s32.totalorder %v104, 1
    %vm117 = vcmp.eq.s32.totalorder %v107, 1
    %vm118 = vcmp.eq.s32.totalorder %v110, 1
    %v119 = vsel %vm111, 0.0, %v71
    %v120 = vsel %vm112, 0.0, %v72
    %v121 = vsel %vm113, 0.0, %v73
    %v122 = vsel %vm114, 0.0, %v74
    %v123 = vsel %vm115, 0.0, %v75
    %v124 = vsel %vm116, 0.0, %v76
    %v125 = vsel %vm117, 0.0, %v77
    %v126 = vsel %vm118, 0.0, %v78
    %vm127 = vcmask 261120
    %128 = vst.msk [vmem:[#allocation2] sm:$0xff] %vm127, %v119
    %129 = vst.msk [vmem:[#allocation2 + $0x8] sm:$0xff] %vm127, %v120
    %130 = vst.msk [vmem:[#allocation2 + $0x10] sm:$0xff] %vm127, %v121
    %131 = vst.msk [vmem:[#allocation2 + $0x18] sm:$0xff] %vm127, %v122
    %132 = vst.msk [vmem:[#allocation2 + $0x20] sm:$0xff] %vm127, %v123
    %133 = vst.msk [vmem:[#allocation2 + $0x28] sm:$0xff] %vm127, %v124
    %134 = vst.msk [vmem:[#allocation2 + $0x30] sm:$0xff] %vm127, %v125
    %135 = vst.msk [vmem:[#allocation2 + $0x38] sm:$0xff] %vm127, %v126
    %v136 = vrot.slane %v119, 1
    %v137 = vrot.slane %v120, 1
    %v138 = vrot.slane %v121, 1
    %v139 = vrot.slane %v122, 1
    %v140 = vrot.slane %v123, 1
    %v141 = vrot.slane %v124, 1
    %v142 = vrot.slane %v125, 1
    %v143 = vrot.slane %v126, 1
    %v144 = vlaneseq
    %v145 = vshrl.u32 %v144, 7
    %vm146 = vcmp.lt.s32.totalorder %v145, 7
    %v147 = vsel %vm146, %v142, %v143
    %v148 = vsel %vm146, %v141, %v142
    %v149 = vsel %vm146, %v140, %v141
    %v150 = vsel %vm146, %v139, %v140
    %v151 = vsel %vm146, %v138, %v139
    %v152 = vsel %vm146, %v137, %v138
    %v153 = vsel %vm146, %v136, %v137
    %v154 = vsel %vm146, %v143, %v136
    %163 = vrot.lane.b32.xlu0 %v153, 32
    %v164 = vpop.permute.xlu0 %163
    %165 = vrot.lane.b32.xlu0 %v152, 32
    %v166 = vpop.permute.xlu0 %165
    %167 = vrot.lane.b32.xlu0 %v151, 32
    %v168 = vpop.permute.xlu0 %167
    %169 = vrot.lane.b32.xlu0 %v150, 32
    %v170 = vpop.permute.xlu0 %169
    %171 = vrot.lane.b32.xlu0 %v149, 32
    %v172 = vpop.permute.xlu0 %171
    %173 = vrot.lane.b32.xlu0 %v148, 32
    %v174 = vpop.permute.xlu0 %173
    %175 = vrot.lane.b32.xlu0 %v147, 32
    %v176 = vpop.permute.xlu0 %175
    %177 = vrot.lane.b32.xlu0 %v154, 32
    %v178 = vpop.permute.xlu0 %177
    %vm187 = vcmask 523520
    %188 = vst.msk [vmem:[#allocation2] sm:$0xff] %vm187, %v164
    %189 = vst.msk [vmem:[#allocation2 + $0x8] sm:$0xff] %vm187, %v166
    %190 = vst.msk [vmem:[#allocation2 + $0x10] sm:$0xff] %vm187, %v168
    %191 = vst.msk [vmem:[#allocation2 + $0x18] sm:$0xff] %vm187, %v170
    %192 = vst.msk [vmem:[#allocation2 + $0x20] sm:$0xff] %vm187, %v172
    %193 = vst.msk [vmem:[#allocation2 + $0x28] sm:$0xff] %vm187, %v174
    %194 = vst.msk [vmem:[#allocation2 + $0x30] sm:$0xff] %vm187, %v176
    %195 = vst.msk [vmem:[#allocation2 + $0x38] sm:$0xff] %vm187, %v178
    %v196 = vrot.slane %v119, 2
    %v197 = vrot.slane %v120, 2
    %v198 = vrot.slane %v121, 2
    %v199 = vrot.slane %v122, 2
    %v200 = vrot.slane %v123, 2
    %v201 = vrot.slane %v124, 2
    %v202 = vrot.slane %v125, 2
    %v203 = vrot.slane %v126, 2
    %vm204 = vcmp.lt.s32.totalorder %v145, 6
    %v205 = vsel %vm204, %v202, %v203
    %v206 = vsel %vm204, %v201, %v202
    %v207 = vsel %vm204, %v200, %v201
    %v208 = vsel %vm204, %v199, %v200
    %v209 = vsel %vm204, %v198, %v199
    %v210 = vsel %vm204, %v197, %v198
    %v211 = vsel %vm204, %v196, %v197
    %v212 = vsel %vm204, %v203, %v196
    %221 = vrot.lane.b32.xlu0 %v211, 64
    %v222 = vpop.permute.xlu0 %221
    %223 = vrot.lane.b32.xlu0 %v210, 64
    %v224 = vpop.permute.xlu0 %223
    %225 = vrot.lane.b32.xlu0 %v209, 64
    %v226 = vpop.permute.xlu0 %225
    %227 = vrot.lane.b32.xlu0 %v208, 64
    %v228 = vpop.permute.xlu0 %227
    %229 = vrot.lane.b32.xlu0 %v207, 64
    %v230 = vpop.permute.xlu0 %229
    %231 = vrot.lane.b32.xlu0 %v206, 64
    %v232 = vpop.permute.xlu0 %231
    %233 = vrot.lane.b32.xlu0 %v205, 64
    %v234 = vpop.permute.xlu0 %233
    %235 = vrot.lane.b32.xlu0 %v212, 64
    %v236 = vpop.permute.xlu0 %235
    %vm245 = vcmask 785920
    %246 = vst.msk [vmem:[#allocation2] sm:$0xff] %vm245, %v222
    %247 = vst.msk [vmem:[#allocation2 + $0x8] sm:$0xff] %vm245, %v224
    %248 = vst.msk [vmem:[#allocation2 + $0x10] sm:$0xff] %vm245, %v226
    %249 = vst.msk [vmem:[#allocation2 + $0x18] sm:$0xff] %vm245, %v228
    %250 = vst.msk [vmem:[#allocation2 + $0x20] sm:$0xff] %vm245, %v230
    %251 = vst.msk [vmem:[#allocation2 + $0x28] sm:$0xff] %vm245, %v232
    %252 = vst.msk [vmem:[#allocation2 + $0x30] sm:$0xff] %vm245, %v234
    %253 = vst.msk [vmem:[#allocation2 + $0x38] sm:$0xff] %vm245, %v236
    %v254 = vrot.slane %v119, 3
    %v255 = vrot.slane %v120, 3
    %v256 = vrot.slane %v121, 3
    %v257 = vrot.slane %v122, 3
    %v258 = vrot.slane %v123, 3
    %v259 = vrot.slane %v124, 3
    %v260 = vrot.slane %v125, 3
    %v261 = vrot.slane %v126, 3
    %vm262 = vcmp.lt.s32.totalorder %v145, 5
    %v263 = vsel %vm262, %v260, %v261
    %v264 = vsel %vm262, %v259, %v260
    %v265 = vsel %vm262, %v258, %v259
    %v266 = vsel %vm262, %v257, %v258
    %v267 = vsel %vm262, %v256, %v257
    %v268 = vsel %vm262, %v255, %v256
    %v269 = vsel %vm262, %v254, %v255
    %v270 = vsel %vm262, %v261, %v254
    %279 = vrot.lane.b32.xlu0 %v269, 96
    %v280 = vpop.permute.xlu0 %279
    %281 = vrot.lane.b32.xlu0 %v268, 96
    %v282 = vpop.permute.xlu0 %281
    %283 = vrot.lane.b32.xlu0 %v267, 96
    %v284 = vpop.permute.xlu0 %283
    %285 = vrot.lane.b32.xlu0 %v266, 96
    %v286 = vpop.permute.xlu0 %285
    %287 = vrot.lane.b32.xlu0 %v265, 96
    %v288 = vpop.permute.xlu0 %287
    %289 = vrot.lane.b32.xlu0 %v264, 96
    %v290 = vpop.permute.xlu0 %289
    %291 = vrot.lane.b32.xlu0 %v263, 96
    %v292 = vpop.permute.xlu0 %291
    %293 = vrot.lane.b32.xlu0 %v270, 96
    %v294 = vpop.permute.xlu0 %293
    %vm303 = vcmask 1048320
    %304 = vst.msk [vmem:[#allocation2] sm:$0xff] %vm303, %v280
    %305 = vst.msk [vmem:[#allocation2 + $0x8] sm:$0xff] %vm303, %v282
    %306 = vst.msk [vmem:[#allocation2 + $0x10] sm:$0xff] %vm303, %v284
    %307 = vst.msk [vmem:[#allocation2 + $0x18] sm:$0xff] %vm303, %v286
    %308 = vst.msk [vmem:[#allocation2 + $0x20] sm:$0xff] %vm303, %v288
    %309 = vst.msk [vmem:[#allocation2 + $0x28] sm:$0xff] %vm303, %v290
    %310 = vst.msk [vmem:[#allocation2 + $0x30] sm:$0xff] %vm303, %v292
    %311 = vst.msk [vmem:[#allocation2 + $0x38] sm:$0xff] %vm303, %v294
    %v312 = vld [vmem:[#allocation2] sm:$0xff]
    %v313 = vld [vmem:[#allocation2 + $0x8] sm:$0xff]
    %v314 = vld [vmem:[#allocation2 + $0x10] sm:$0xff]
    %v315 = vld [vmem:[#allocation2 + $0x18] sm:$0xff]
    %v316 = vld [vmem:[#allocation2 + $0x20] sm:$0xff]
    %v317 = vld [vmem:[#allocation2 + $0x28] sm:$0xff]
    %v318 = vld [vmem:[#allocation2 + $0x30] sm:$0xff]
    %v319 = vld [vmem:[#allocation2 + $0x38] sm:$0xff]
    %v320 = vld [vmem:[#allocation3] sm:$0xff]
    %v321 = vld [vmem:[#allocation3 + $0x8] sm:$0xff]
    %v322 = vld [vmem:[#allocation3 + $0x10] sm:$0xff]
    %v323 = vld [vmem:[#allocation3 + $0x18] sm:$0xff]
    %v324 = vld [vmem:[#allocation3 + $0x20] sm:$0xff]
    %v325 = vld [vmem:[#allocation3 + $0x28] sm:$0xff]
    %v326 = vld [vmem:[#allocation3 + $0x30] sm:$0xff]
    %v327 = vld [vmem:[#allocation3 + $0x38] sm:$0xff]
    %v328 = vld [vmem:[#allocation3 + $0x40] sm:$0xff]
    %v329 = vld [vmem:[#allocation3 + $0x48] sm:$0xff]
    %v330 = vld [vmem:[#allocation3 + $0x50] sm:$0xff]
    %v331 = vld [vmem:[#allocation3 + $0x58] sm:$0xff]
    %v332 = vld [vmem:[#allocation3 + $0x60] sm:$0xff]
    %v333 = vld [vmem:[#allocation3 + $0x68] sm:$0xff]
    %v334 = vld [vmem:[#allocation3 + $0x70] sm:$0xff]
    %v335 = vld [vmem:[#allocation3 + $0x78] sm:$0xff]
    %336 = vmatprep.subr.mxu0 0.0
    %337 = vmatpush1.msra.mxu0 %v320
    %338 = vmatprep.subr.mxu0 0.0
    %339 = vmatpush1.msra.mxu0 %v321
    %340 = vmatprep.subr.mxu0 0.0
    %341 = vmatpush1.msra.mxu0 %v322
    %342 = vmatprep.subr.mxu0 0.0
    %343 = vmatpush1.msra.mxu0 %v323
    %344 = vmatprep.subr.mxu0 0.0
    %345 = vmatpush1.msra.mxu0 %v324
    %346 = vmatprep.subr.mxu0 0.0
    %347 = vmatpush1.msra.mxu0 %v325
    %348 = vmatprep.subr.mxu0 0.0
    %349 = vmatpush1.msra.mxu0 %v326
    %350 = vmatprep.subr.mxu0 0.0
    %351 = vmatpush1.msra.mxu0 %v327
    %352 = vmatprep.subr.mxu0 0.0
    %353 = vmatpush1.msra.mxu0 %v328
    %354 = vmatprep.subr.mxu0 0.0
    %355 = vmatpush1.msra.mxu0 %v329
    %356 = vmatprep.subr.mxu0 0.0
    %357 = vmatpush1.msra.mxu0 %v330
    %358 = vmatprep.subr.mxu0 0.0
    %359 = vmatpush1.msra.mxu0 %v331
    %360 = vmatprep.subr.mxu0 0.0
    %361 = vmatpush1.msra.mxu0 %v332
    %362 = vmatprep.subr.mxu0 0.0
    %363 = vmatpush1.msra.mxu0 %v333
    %364 = vmatprep.subr.mxu0 0.0
    %365 = vmatpush1.msra.mxu0 %v334
    %366 = vmatprep.subr.mxu0 0.0
    %367 = vmatpush1.msra.mxu0 %v335
    %368 = vmatprep.subr.mxu0 0.0
    %369 = vmatpush1.msra.mxu0 0.0
    %370 = vmatprep.subr.mxu0 0.0
    %371 = vmatpush1.msra.mxu0 0.0
    %372 = vmatprep.subr.mxu0 0.0
    %373 = vmatpush1.msra.mxu0 0.0
    %374 = vmatprep.subr.mxu0 0.0
    %375 = vmatpush1.msra.mxu0 0.0
    %376 = vmatprep.subr.mxu0 0.0
    %377 = vmatpush1.msra.mxu0 0.0
    %378 = vmatprep.subr.mxu0 0.0
    %379 = vmatpush1.msra.mxu0 0.0
    %380 = vmatprep.subr.mxu0 0.0
    %381 = vmatpush1.msra.mxu0 0.0
    %382 = vmatprep.subr.mxu0 0.0
    %383 = vmatpush1.msra.mxu0 0.0
    %384 = vmatprep.subr.mxu0 0.0
    %385 = vmatpush1.msra.mxu0 0.0
    %386 = vmatprep.subr.mxu0 0.0
    %387 = vmatpush1.msra.mxu0 0.0
    %388 = vmatprep.subr.mxu0 0.0
    %389 = vmatpush1.msra.mxu0 0.0
    %390 = vmatprep.subr.mxu0 0.0
    %391 = vmatpush1.msra.mxu0 0.0
    %392 = vmatprep.subr.mxu0 0.0
    %393 = vmatpush1.msra.mxu0 0.0
    %394 = vmatprep.subr.mxu0 0.0
    %395 = vmatpush1.msra.mxu0 0.0
    %396 = vmatprep.subr.mxu0 0.0
    %397 = vmatpush1.msra.mxu0 0.0
    %398 = vmatprep.subr.mxu0 0.0
    %399 = vmatpush1.msra.mxu0 0.0
    %400 = vmatprep.mubr.f32.mxu0 0.0
    %401 = vmatmul.mubr.f32.gmra.mrb[0].mxu0 %v312
    %v402 = vpop.f32.mrb[0].mxu0
    %v403 = vadd.f32 0.0, %v402
    %v404 = vpop.f32.mrb[0].mxu0
    %405 = vmatprep.mubr.f32.mxu0 0.0
    %406 = vmatmul.mubr.f32.gmra.mrb[0].mxu0 %v313
    %v407 = vpop.f32.mrb[0].mxu0
    %v408 = vadd.f32 0.0, %v407
    %v409 = vpop.f32.mrb[0].mxu0
    %410 = vmatprep.mubr.f32.mxu0 0.0
    %411 = vmatmul.mubr.f32.gmra.mrb[0].mxu0 %v314
    %v412 = vpop.f32.mrb[0].mxu0
    %v413 = vadd.f32 0.0, %v412
    %v414 = vpop.f32.mrb[0].mxu0
    %415 = vmatprep.mubr.f32.mxu0 0.0
    %416 = vmatmul.mubr.f32.gmra.mrb[0].mxu0 %v315
    %v417 = vpop.f32.mrb[0].mxu0
    %v418 = vadd.f32 0.0, %v417
    %v419 = vpop.f32.mrb[0].mxu0
    %420 = vmatprep.mubr.f32.mxu0 0.0
    %421 = vmatmul.mubr.f32.gmra.mrb[0].mxu0 %v316
    %v422 = vpop.f32.mrb[0].mxu0
    %v423 = vadd.f32 0.0, %v422
    %v424 = vpop.f32.mrb[0].mxu0
    %425 = vmatprep.mubr.f32.mxu0 0.0
    %426 = vmatmul.mubr.f32.gmra.mrb[0].mxu0 %v317
    %v427 = vpop.f32.mrb[0].mxu0
    %v428 = vadd.f32 0.0, %v427
    %v429 = vpop.f32.mrb[0].mxu0
    %430 = vmatprep.mubr.f32.mxu0 0.0
    %431 = vmatmul.mubr.f32.gmra.mrb[0].mxu0 %v318
    %v432 = vpop.f32.mrb[0].mxu0
    %v433 = vadd.f32 0.0, %v432
    %v434 = vpop.f32.mrb[0].mxu0
    %435 = vmatprep.mubr.f32.mxu0 0.0
    %436 = vmatmul.mubr.f32.gmra.mrb[0].mxu0 %v319
    %v437 = vpop.f32.mrb[0].mxu0
    %v438 = vadd.f32 0.0, %v437
    %v439 = vpop.f32.mrb[0].mxu0
    %440 = vdwg.mxu0
    %v441 = vld [vmem:[%s4] sm:$0xff]
    %v442 = vadd.f32 %v403, %v441
    %v443 = vadd.f32 %v408, %v441
    %v444 = vadd.f32 %v413, %v441
    %v445 = vadd.f32 %v418, %v441
    %v446 = vadd.f32 %v423, %v441
    %v447 = vadd.f32 %v428, %v441
    %v448 = vadd.f32 %v433, %v441
    %v449 = vadd.f32 %v438, %v441
    %v450 = vmax.f32 %v442, 0.0
    %v451 = vmax.f32 %v443, 0.0
    %v452 = vmax.f32 %v444, 0.0
    %v453 = vmax.f32 %v445, 0.0
    %v454 = vmax.f32 %v446, 0.0
    %v455 = vmax.f32 %v447, 0.0
    %v456 = vmax.f32 %v448, 0.0
    %v457 = vmax.f32 %v449, 0.0
    %v458 = vrot.slane %v450, 4
    %v459 = vmax.f32 %v450, %v458
    %v460 = vrot.slane %v459, 2
    %v461 = vmax.f32 %v459, %v460
    %v462 = vrot.slane %v461, 1
    %v463 = vmax.f32 %v461, %v462
    %v464 = vrot.slane %v451, 4
    %v465 = vmax.f32 %v451, %v464
    %v466 = vrot.slane %v465, 2
    %v467 = vmax.f32 %v465, %v466
    %v468 = vrot.slane %v467, 1
    %v469 = vmax.f32 %v467, %v468
    %v470 = vrot.slane %v452, 4
    %v471 = vmax.f32 %v452, %v470
    %v472 = vrot.slane %v471, 2
    %v473 = vmax.f32 %v471, %v472
    %v474 = vrot.slane %v473, 1
    %v475 = vmax.f32 %v473, %v474
    %v476 = vrot.slane %v453, 4
    %v477 = vmax.f32 %v453, %v476
    %v478 = vrot.slane %v477, 2
    %v479 = vmax.f32 %v477, %v478
    %v480 = vrot.slane %v479, 1
    %v481 = vmax.f32 %v479, %v480
    %v482 = vrot.slane %v454, 4
    %v483 = vmax.f32 %v454, %v482
    %v484 = vrot.slane %v483, 2
    %v485 = vmax.f32 %v483, %v484
    %v486 = vrot.slane %v485, 1
    %v487 = vmax.f32 %v485, %v486
    %v488 = vrot.slane %v455, 4
    %v489 = vmax.f32 %v455, %v488
    %v490 = vrot.slane %v489, 2
    %v491 = vmax.f32 %v489, %v490
    %v492 = vrot.slane %v491, 1
    %v493 = vmax.f32 %v491, %v492
    %v494 = vrot.slane %v456, 4
    %v495 = vmax.f32 %v456, %v494
    %v496 = vrot.slane %v495, 2
    %v497 = vmax.f32 %v495, %v496
    %v498 = vrot.slane %v497, 1
    %v499 = vmax.f32 %v497, %v498
    %v500 = vrot.slane %v457, 4
    %v501 = vmax.f32 %v457, %v500
    %v502 = vrot.slane %v501, 2
    %v503 = vmax.f32 %v501, %v502
    %v504 = vrot.slane %v503, 1
    %v505 = vmax.f32 %v503, %v504
    %v506 = vld [vmem:[#allocation6] sm:$0xff]
    %v507 = vld [vmem:[#allocation6 + $0x8] sm:$0xff]
    %v508 = vld [vmem:[#allocation6 + $0x10] sm:$0xff]
    %v509 = vld [vmem:[#allocation6 + $0x18] sm:$0xff]
    %v510 = vld [vmem:[#allocation6 + $0x20] sm:$0xff]
    %v511 = vld [vmem:[#allocation6 + $0x28] sm:$0xff]
    %v512 = vld [vmem:[#allocation6 + $0x30] sm:$0xff]
    %v513 = vld [vmem:[#allocation6 + $0x38] sm:$0xff]
    %v514 = vld [vmem:[#allocation6 + $0x40] sm:$0xff]
    %v515 = vld [vmem:[#allocation6 + $0x48] sm:$0xff]
    %v516 = vld [vmem:[#allocation6 + $0x50] sm:$0xff]
    %v517 = vld [vmem:[#allocation6 + $0x58] sm:$0xff]
    %v518 = vld [vmem:[#allocation6 + $0x60] sm:$0xff]
    %v519 = vld [vmem:[#allocation6 + $0x68] sm:$0xff]
    %v520 = vld [vmem:[#allocation6 + $0x70] sm:$0xff]
    %v521 = vld [vmem:[#allocation6 + $0x78] sm:$0xff]
    %v522 = vld [vmem:[%s6] sm:$0x1]
    %v524 = vlaneseq
    %v525 = vshrl.u32 %v524, 7
    %v526 = vsub.s32 0, %v525
    %v527 = vrot.slane %v522, %v526
    %vm537 = vcmask 1041409
    %v538 = vsel %vm537, %v469, %v463
    %vm539 = vcmask 1042434
    %v540 = vsel %vm539, %v475, %v538
    %vm541 = vcmask 1043459
    %v542 = vsel %vm541, %v481, %v540
    %vm543 = vcmask 1044484
    %v544 = vsel %vm543, %v487, %v542
    %vm545 = vcmask 1045509
    %v546 = vsel %vm545, %v493, %v544
    %vm547 = vcmask 1046534
    %v548 = vsel %vm547, %v499, %v546
    %vm549 = vcmask 1047559
    %v550 = vsel %vm549, %v505, %v548
    %552 = vmatprep.subr.mxu0 0.0
    %553 = vmatpush1.msra.mxu0 %v506
    %554 = vmatprep.subr.mxu0 0.0
    %555 = vmatpush1.msra.mxu0 %v507
    %556 = vmatprep.subr.mxu0 0.0
    %557 = vmatpush1.msra.mxu0 %v508
    %558 = vmatprep.subr.mxu0 0.0
    %559 = vmatpush1.msra.mxu0 %v509
    %560 = vmatprep.subr.mxu0 0.0
    %561 = vmatpush1.msra.mxu0 %v510
    %562 = vmatprep.subr.mxu0 0.0
    %563 = vmatpush1.msra.mxu0 %v511
    %564 = vmatprep.subr.mxu0 0.0
    %565 = vmatpush1.msra.mxu0 %v512
    %566 = vmatprep.subr.mxu0 0.0
    %567 = vmatpush1.msra.mxu0 %v513
    %568 = vmatprep.subr.mxu0 0.0
    %569 = vmatpush1.msra.mxu0 %v514
    %570 = vmatprep.subr.mxu0 0.0
    %571 = vmatpush1.msra.mxu0 %v515
    %572 = vmatprep.subr.mxu0 0.0
    %573 = vmatpush1.msra.mxu0 %v516
    %574 = vmatprep.subr.mxu0 0.0
    %575 = vmatpush1.msra.mxu0 %v517
    %576 = vmatprep.subr.mxu0 0.0
    %577 = vmatpush1.msra.mxu0 %v518
    %578 = vmatprep.subr.mxu0 0.0
    %579 = vmatpush1.msra.mxu0 %v519
    %580 = vmatprep.subr.mxu0 0.0
    %581 = vmatpush1.msra.mxu0 %v520
    %582 = vmatprep.subr.mxu0 0.0
    %583 = vmatpush1.msra.mxu0 %v521
    %584 = vmatprep.subr.mxu0 0.0
    %585 = vmatpush1.msra.mxu0 0.0
    %586 = vmatprep.subr.mxu0 0.0
    %587 = vmatpush1.msra.mxu0 0.0
    %588 = vmatprep.subr.mxu0 0.0
    %589 = vmatpush1.msra.mxu0 0.0
    %590 = vmatprep.subr.mxu0 0.0
    %591 = vmatpush1.msra.mxu0 0.0
    %592 = vmatprep.subr.mxu0 0.0
    %593 = vmatpush1.msra.mxu0 0.0
    %594 = vmatprep.subr.mxu0 0.0
    %595 = vmatpush1.msra.mxu0 0.0
    %596 = vmatprep.subr.mxu0 0.0
    %597 = vmatpush1.msra.mxu0 0.0
    %598 = vmatprep.subr.mxu0 0.0
    %599 = vmatpush1.msra.mxu0 0.0
    %600 = vmatprep.subr.mxu0 0.0
    %601 = vmatpush1.msra.mxu0 0.0
    %602 = vmatprep.subr.mxu0 0.0
    %603 = vmatpush1.msra.mxu0 0.0
    %604 = vmatprep.subr.mxu0 0.0
    %605 = vmatpush1.msra.mxu0 0.0
    %606 = vmatprep.subr.mxu0 0.0
    %607 = vmatpush1.msra.mxu0 0.0
    %608 = vmatprep.subr.mxu0 0.0
    %609 = vmatpush1.msra.mxu0 0.0
    %610 = vmatprep.subr.mxu0 0.0
    %611 = vmatpush1.msra.mxu0 0.0
    %612 = vmatprep.subr.mxu0 0.0
    %613 = vmatpush1.msra.mxu0 0.0
    %614 = vmatprep.subr.mxu0 0.0
    %615 = vmatpush1.msra.mxu0 0.0
    %616 = vmatprep.mubr.f32.mxu0 0.0
    %617 = vmatmul.mubr.f32.gmra.mrb[0].mxu0 %v550
    %v618 = vpop.f32.mrb[0].mxu0
    %v619 = vadd.f32 %v527, %v618
    %v620 = vpop.f32.mrb[0].mxu0
    %621 = vdwg.mxu0
    %v622 = vld [vmem:[%s2] sm:$0xff]
    %vm623 = vcmp.eq.f32.partialorder %v622, 0.0
    %v624 = vsel %vm623, -1e+09, %v619
    %625 = vst [vmem:[#allocation8] sm:$0xff] %v624
    // Predicated region
    $region38: #{tpu_custom_call.1} parent=1 // pred_check
      _
    $region39: #{tpu_custom_call.1} parent=1 // pred_check_branch
      %627 = sbr.rel (0) target = $region41
    $region40: #{tpu_custom_call.1} parent=1 // pred_region
      %s629 = ssub.s32 128, 128
      %630 = vsyncadd [#allocation5], %s629
      %s632 = sshll.u32 [#allocation8], 4
      %s633 = int_to_ptr.vmem [resolvable:$true] %s632
      %635 = dma.vmem_to_hbm [thread:$0]  %s633, 128, %s7, [#allocation5]
    $region41: #{tpu_custom_call.1} parent=1 // pred_fallthru
      _
    // Predicated region
    $region42: #{tpu_custom_call.1} parent=1 // pred_check
      _
    $region43: #{tpu_custom_call.1} parent=1 // pred_check_branch
      %637 = sbr.rel (0) target = $region45
    $region44: #{tpu_custom_call.1} parent=1 // pred_region
      %638 = dma.done [#allocation5], 128
    $region45: #{tpu_custom_call.1} parent=1 // pred_fallthru
      _
    %639 = vsyncpa [#allocation4], 1
    %640 = vsyncpa [#allocation7], 1
    %641 = vsyncpa [#allocation5], 1

</llo_original>
